<compile_context>
chip_gen: v6e
topology: v6e:2x2x1
jax: 0.10.0
libtpu: 0.0.40
codegen_flags: <defaults>
</compile_context>

<pallas_src>
import jax
import jax.numpy as jnp
from jax import lax
from jax.experimental import pallas as pl
from jax.experimental.pallas import tpu as pltpu

# ---- model hyper-params (Mamba(d_model, d_state, d_conv, expand) + Linear head) ----
D_MODEL = 32
D_STATE = 8
D_CONV = 4
EXPAND = 2
D_INNER = EXPAND * D_MODEL              # 64
DT_RANK = -(-D_MODEL // 16)             # ceil(d_model / 16) = 2
BATCH = 2
SEQ = 8

# row offsets inside the packed "small" parameter array (built in the wrapper)
_W_CONV = 0
_W_DT = _W_CONV + D_CONV                # 4
_A_T = _W_DT + DT_RANK                  # 6
_B_CONV = _A_T + D_STATE                # 14
_B_DT = _B_CONV + 1                     # 15
_D = _B_DT + 1                          # 16
_B_LIN = _D + 1                         # 17
_N_SMALL = _B_LIN + 1                   # 18


def _silu(x):
    return x * jax.nn.sigmoid(x)


def mamba_kernel(x_ref, w_in_ref, w_x_ref, w_head_ref, small_ref, o_ref):
    L = x_ref.shape[1]
    xb = x_ref[0]                                     # (L, d_model)
    small = small_ref[...]                            # (18, d_inner) packed params, in registers

    # ---- in_proj: (L, d_model) @ (d_model, 2*d_inner), split into conv path / gate ----
    xz = jnp.dot(xb, w_in_ref[...], preferred_element_type=jnp.float32)
    xp = xz[:, :D_INNER]
    z = xz[:, D_INNER:]

    # ---- depthwise causal conv1d (kernel=D_CONV, pad=D_CONV-1, truncated to L) + SiLU ----
    rows = lax.broadcasted_iota(jnp.int32, (L, D_INNER), 0)
    xc = jnp.zeros((L, D_INNER), jnp.float32) + small[_B_CONV:_B_CONV + 1, :]
    for k in range(D_CONV):                           # unrolled, D_CONV is tiny
        shift = D_CONV - 1 - k
        wk = small[_W_CONV + k:_W_CONV + k + 1, :]    # (1, d_inner) tap k
        if shift == 0:
            seg = xp
        else:
            seg = jnp.where(rows >= shift, pltpu.roll(xp, shift, axis=0), 0.0)
        xc = xc + wk * seg
    xc = _silu(xc)

    # ---- x_proj; columns pre-reordered to [B | C | dt] (lane-aligned slices) ----
    x_dbl = jnp.dot(xc, w_x_ref[...], preferred_element_type=jnp.float32)   # (L, 2*ds+dt_rank)
    bc_T = x_dbl[:, :2 * D_STATE].T                   # (2*d_state, L): B^T rows then C^T rows
    BmT = bc_T[:D_STATE, :]                           # (d_state, L)
    CmT = bc_T[D_STATE:, :]                           # (d_state, L)
    dt = x_dbl[:, 2 * D_STATE:2 * D_STATE + DT_RANK]  # (L, dt_rank)

    # ---- dt_proj + softplus (DT_RANK tiny -> unrolled rank-1 updates) ----
    ddt = jnp.zeros((L, D_INNER), jnp.float32) + small[_B_DT:_B_DT + 1, :]
    for r in range(DT_RANK):
        ddt = ddt + dt[:, r:r + 1] * small[_W_DT + r:_W_DT + r + 1, :]
    delta = jax.nn.softplus(ddt)                      # (L, d_inner)

    # ---- selective scan: fully unrolled, state (d_state, d_inner) => d_inner on lanes.
    #      Discretisation and the y-reduction are fused per timestep; no VMEM scratch. ----
    A_T = small[_A_T:_A_T + D_STATE, :]               # (d_state, d_inner), negative
    du = delta * xc                                   # (L, d_inner)
    h = jnp.zeros((D_STATE, D_INNER), jnp.float32)
    ys = []
    for t in range(L):
        dA_t = jnp.exp(delta[t:t + 1, :] * A_T)       # (d_state, d_inner)
        dBu_t = BmT[:, t:t + 1] * du[t:t + 1, :]      # (d_state, d_inner)
        h = dA_t * h + dBu_t
        ys.append(jnp.sum(h * CmT[:, t:t + 1], axis=0, keepdims=True))   # (1, d_inner)
    y = jnp.concatenate(ys, axis=0)                   # (L, d_inner)

    # ---- skip (D*u), SiLU gate, fused (out_proj @ linear) head + bias ----
    y = y + xc * small[_D:_D + 1, :]
    y = y * _silu(z)
    out = jnp.dot(y, w_head_ref[...], preferred_element_type=jnp.float32)   # (L, d_model)
    out = out + small[_B_LIN:_B_LIN + 1, :D_MODEL]
    o_ref[0] = out
    # TODO(synk): output last dim is 32 (<128) -> masked stores; a lane-dense (1, L*d_model)
    # out layout would need an in-kernel relayout that costs more than it saves at this size.


def self_supervised_mamba(x, p):
    B, L, dm = x.shape

    # ---- one-time wrapper-side algebra / layout prep (pure layout plumbing) ----
    w_head = p['w_out'] @ p['w_lin']                           # fold out_proj + head Linear
    w_x_r = jnp.concatenate(                                   # reorder [dt|B|C] -> [B|C|dt]
        [p['w_x'][:, DT_RANK:DT_RANK + D_STATE],
         p['w_x'][:, DT_RANK + D_STATE:],
         p['w_x'][:, :DT_RANK]], axis=1)
    b_lin_pad = jnp.zeros((1, D_INNER), jnp.float32).at[:, :D_MODEL].set(p['b_lin'])
    small = jnp.concatenate(                                   # (18, d_inner) packed params
        [p['w_conv'], p['w_dt'], p['A'].T,
         p['b_conv'], p['b_dt'], p['D'], b_lin_pad], axis=0)
    assert small.shape == (_N_SMALL, D_INNER)

    grid_spec = pltpu.PrefetchScalarGridSpec(
        num_scalar_prefetch=0,
        grid=(B,),
        in_specs=[
            pl.BlockSpec((1, L, dm), lambda b: (b, 0, 0)),     # x (one batch per grid step)
            pl.BlockSpec(p['w_in'].shape, lambda b: (0, 0)),   # in_proj weight
            pl.BlockSpec(w_x_r.shape, lambda b: (0, 0)),       # x_proj weight (reordered)
            pl.BlockSpec(w_head.shape, lambda b: (0, 0)),      # folded out_proj @ linear
            pl.BlockSpec(small.shape, lambda b: (0, 0)),       # packed small params
        ],
        out_specs=pl.BlockSpec((1, L, dm), lambda b: (b, 0, 0)),
    )
    return pl.pallas_call(
        mamba_kernel,
        out_shape=jax.ShapeDtypeStruct((B, L, dm), jnp.float32),
        grid_spec=grid_spec,
        compiler_params=pltpu.CompilerParams(dimension_semantics=("parallel",)),
    )(x, p['w_in'], w_x_r, w_head, small)


# ---------------- deterministic parameter init (shapes from Mamba.__init__) ----------------
def init_params(key):
    ks = jax.random.split(key, 8)

    def rnd(k, shape, scale):
        return (scale * jax.random.normal(k, shape)).astype(jnp.float32)

    p = {}
    p['w_in'] = rnd(ks[0], (D_MODEL, 2 * D_INNER), D_MODEL ** -0.5)        # in_proj (no bias)
    p['w_conv'] = rnd(ks[1], (D_CONV, D_INNER), D_CONV ** -0.5)            # depthwise taps
    p['b_conv'] = rnd(ks[2], (1, D_INNER), 0.1)
    p['w_x'] = rnd(ks[3], (D_INNER, DT_RANK + 2 * D_STATE), D_INNER ** -0.5)
    p['w_dt'] = rnd(ks[4], (DT_RANK, D_INNER), DT_RANK ** -0.5)
    p['b_dt'] = rnd(ks[5], (1, D_INNER), 0.1)
    A_log = jnp.log(jnp.arange(1, D_STATE + 1, dtype=jnp.float32))          # S4D-real init
    p['A'] = -jnp.exp(jnp.broadcast_to(A_log, (D_INNER, D_STATE))).astype(jnp.float32)
    p['D'] = jnp.ones((1, D_INNER), jnp.float32)
    p['w_out'] = rnd(ks[6], (D_INNER, D_MODEL), D_INNER ** -0.5)            # out_proj (no bias)
    p['w_lin'] = rnd(ks[7], (D_MODEL, D_MODEL), D_MODEL ** -0.5)            # extra nn.Linear
    p['b_lin'] = jnp.zeros((1, D_MODEL), jnp.float32)
    return p


# ---------------- pure-JAX reference (canonical param layout) for correctness ----------------
def ref_forward(x, p):
    B, L, dm = x.shape
    xz = x @ p['w_in']
    xp, z = xz[..., :D_INNER], xz[..., D_INNER:]
    xc = jnp.zeros_like(xp) + p['b_conv']
    for k in range(D_CONV):
        shift = D_CONV - 1 - k
        seg = jnp.pad(xp, ((0, 0), (shift, 0), (0, 0)))[:, :L, :]
        xc = xc + p['w_conv'][k] * seg
    xc = xc * jax.nn.sigmoid(xc)
    x_dbl = xc @ p['w_x']
    dt = x_dbl[..., :DT_RANK]
    Bm = x_dbl[..., DT_RANK:DT_RANK + D_STATE]
    Cm = x_dbl[..., DT_RANK + D_STATE:]
    delta = jax.nn.softplus(dt @ p['w_dt'] + p['b_dt'])
    dA = jnp.exp(delta[..., None] * p['A'][None, None])
    dBu = (delta * xc)[..., None] * Bm[..., None, :]

    def scan_fn(h, ins):
        dA_t, dBu_t = ins
        h = dA_t * h + dBu_t
        return h, h

    def per_batch(dA_b, dBu_b):
        _, hs = lax.scan(scan_fn, jnp.zeros((D_INNER, D_STATE), jnp.float32), (dA_b, dBu_b))
        return hs

    hs = jax.vmap(per_batch)(dA, dBu)
    y = jnp.sum(hs * Cm[..., None, :], axis=-1) + xc * p['D']
    y = y * (z * jax.nn.sigmoid(z))
    return (y @ p['w_out']) @ p['w_lin'] + p['b_lin']


if __name__ == "__main__":
    key = jax.random.PRNGKey(0)
    kx, kp = jax.random.split(key)
    x = jax.random.normal(kx, (BATCH, SEQ, D_MODEL), dtype=jnp.float32)
    params = init_params(kp)

    out = self_supervised_mamba(x, params)
    out = jax.block_until_ready(out)
    assert out.shape == (BATCH, SEQ, D_MODEL)

    ref = ref_forward(x, params)
    if not jnp.allclose(out, ref, atol=5e-2, rtol=5e-2):
        raise AssertionError("Pallas kernel does not match JAX reference")

    print("KERNEL_OK")
</pallas_src>

<mosaic_0001>
module attributes {stable_mosaic.version = 11 : i64} {
  func.func @mamba_kernel(%arg0: i32, %arg1: memref<1x8x32xf32, #tpu.memory_space<vmem>>, %arg2: memref<32x128xf32, #tpu.memory_space<vmem>>, %arg3: memref<64x18xf32, #tpu.memory_space<vmem>>, %arg4: memref<64x32xf32, #tpu.memory_space<vmem>>, %arg5: memref<18x64xf32, #tpu.memory_space<vmem>>, %arg6: memref<1x8x32xf32, #tpu.memory_space<vmem>>) attributes {dimension_semantics = [#tpu.dimension_semantics<parallel>], iteration_bounds = array<i64: 2>, scalar_prefetch = 0 : i64, scratch_operands = 0 : i64, tpu.core_type = #tpu.core_type<tc>, window_params = [{transform_indices = @transform_0, window_bounds = array<i64: 1, 8, 32>}, {pipeline_mode = #tpu.pipeline_mode<synchronous>, transform_indices = @transform_1, window_bounds = array<i64: 32, 128>}, {pipeline_mode = #tpu.pipeline_mode<synchronous>, transform_indices = @transform_2, window_bounds = array<i64: 64, 18>}, {pipeline_mode = #tpu.pipeline_mode<synchronous>, transform_indices = @transform_3, window_bounds = array<i64: 64, 32>}, {pipeline_mode = #tpu.pipeline_mode<synchronous>, transform_indices = @transform_4, window_bounds = array<i64: 18, 64>}, {transform_indices = @transform_5, window_bounds = array<i64: 1, 8, 32>}]} {
    %c0 = arith.constant 0 : index
    %c0_0 = arith.constant 0 : index
    %c0_1 = arith.constant 0 : index
    %0 = vector.load %arg1[%c0, %c0_0, %c0_1] : memref<1x8x32xf32, #tpu.memory_space<vmem>>, vector<1x8x32xf32>
    %1 = vector.shape_cast %0 : vector<1x8x32xf32> to vector<8x32xf32>
    %c0_2 = arith.constant 0 : index
    %c0_3 = arith.constant 0 : index
    %2 = vector.load %arg5[%c0_2, %c0_3] : memref<18x64xf32, #tpu.memory_space<vmem>>, vector<18x64xf32>
    %c0_4 = arith.constant 0 : index
    %c0_5 = arith.constant 0 : index
    %3 = vector.load %arg2[%c0_4, %c0_5] : memref<32x128xf32, #tpu.memory_space<vmem>>, vector<32x128xf32>
    %cst = arith.constant dense<0.000000e+00> : vector<8x128xf32>
    %4 = tpu.matmul %1, %3, %cst {dimension_numbers = #tpu.dot_dimension_numbers<[1], [0], [0], [1], [0, 0, 1, 1], [], []>} : vector<8x32xf32>, vector<32x128xf32>, vector<8x128xf32> -> vector<8x128xf32>
    %5 = vector.extract_strided_slice %4 {offsets = [0, 0], sizes = [8, 64], strides = [1, 1]} : vector<8x128xf32> to vector<8x64xf32>
    %6 = vector.extract_strided_slice %4 {offsets = [0, 64], sizes = [8, 64], strides = [1, 1]} : vector<8x128xf32> to vector<8x64xf32>
    %7 = tpu.iota {dimensions = array<i32: 0>} : vector<8x64xi32>
    %cst_6 = arith.constant 0.000000e+00 : f32
    %8 = vector.broadcast %cst_6 : f32 to vector<8x64xf32>
    %9 = vector.extract_strided_slice %2 {offsets = [14, 0], sizes = [1, 64], strides = [1, 1]} : vector<18x64xf32> to vector<1x64xf32>
    %10 = vector.broadcast %9 : vector<1x64xf32> to vector<8x64xf32>
    %11 = arith.addf %8, %10 : vector<8x64xf32>
    %12 = vector.extract_strided_slice %2 {offsets = [0, 0], sizes = [1, 64], strides = [1, 1]} : vector<18x64xf32> to vector<1x64xf32>
    %c3_i32 = arith.constant 3 : i32
    %13 = vector.broadcast %c3_i32 : i32 to vector<8x64xi32>
    %14 = arith.cmpi sge, %7, %13 : vector<8x64xi32>
    %c3_i32_7 = arith.constant 3 : i32
    %15 = tpu.dynamic_rotate %5 by %c3_i32_7 dim 0 : vector<8x64xf32>, i32 -> vector<8x64xf32>
    %cst_8 = arith.constant 0.000000e+00 : f32
    %16 = vector.broadcast %cst_8 : f32 to vector<8x64xf32>
    %17 = arith.select %14, %15, %16 : vector<8x64xi1>, vector<8x64xf32>
    %18 = vector.broadcast %12 : vector<1x64xf32> to vector<8x64xf32>
    %19 = arith.mulf %18, %17 : vector<8x64xf32>
    %20 = arith.addf %11, %19 : vector<8x64xf32>
    %21 = vector.extract_strided_slice %2 {offsets = [1, 0], sizes = [1, 64], strides = [1, 1]} : vector<18x64xf32> to vector<1x64xf32>
    %c2_i32 = arith.constant 2 : i32
    %22 = vector.broadcast %c2_i32 : i32 to vector<8x64xi32>
    %23 = arith.cmpi sge, %7, %22 : vector<8x64xi32>
    %c2_i32_9 = arith.constant 2 : i32
    %24 = tpu.dynamic_rotate %5 by %c2_i32_9 dim 0 : vector<8x64xf32>, i32 -> vector<8x64xf32>
    %cst_10 = arith.constant 0.000000e+00 : f32
    %25 = vector.broadcast %cst_10 : f32 to vector<8x64xf32>
    %26 = arith.select %23, %24, %25 : vector<8x64xi1>, vector<8x64xf32>
    %27 = vector.broadcast %21 : vector<1x64xf32> to vector<8x64xf32>
    %28 = arith.mulf %27, %26 : vector<8x64xf32>
    %29 = arith.addf %20, %28 : vector<8x64xf32>
    %30 = vector.extract_strided_slice %2 {offsets = [2, 0], sizes = [1, 64], strides = [1, 1]} : vector<18x64xf32> to vector<1x64xf32>
    %c1_i32 = arith.constant 1 : i32
    %31 = vector.broadcast %c1_i32 : i32 to vector<8x64xi32>
    %32 = arith.cmpi sge, %7, %31 : vector<8x64xi32>
    %c1_i32_11 = arith.constant 1 : i32
    %33 = tpu.dynamic_rotate %5 by %c1_i32_11 dim 0 : vector<8x64xf32>, i32 -> vector<8x64xf32>
    %cst_12 = arith.constant 0.000000e+00 : f32
    %34 = vector.broadcast %cst_12 : f32 to vector<8x64xf32>
    %35 = arith.select %32, %33, %34 : vector<8x64xi1>, vector<8x64xf32>
    %36 = vector.broadcast %30 : vector<1x64xf32> to vector<8x64xf32>
    %37 = arith.mulf %36, %35 : vector<8x64xf32>
    %38 = arith.addf %29, %37 : vector<8x64xf32>
    %39 = vector.extract_strided_slice %2 {offsets = [3, 0], sizes = [1, 64], strides = [1, 1]} : vector<18x64xf32> to vector<1x64xf32>
    %40 = vector.broadcast %39 : vector<1x64xf32> to vector<8x64xf32>
    %41 = arith.mulf %40, %5 : vector<8x64xf32>
    %42 = arith.addf %38, %41 : vector<8x64xf32>
    %43 = arith.negf %42 : vector<8x64xf32>
    %44 = math.exp %43 : vector<8x64xf32>
    %cst_13 = arith.constant 1.000000e+00 : f32
    %45 = vector.broadcast %cst_13 : f32 to vector<8x64xf32>
    %46 = arith.addf %45, %44 : vector<8x64xf32>
    %47 = arith.divf %45, %46 : vector<8x64xf32>
    %48 = arith.mulf %42, %47 : vector<8x64xf32>
    %c0_14 = arith.constant 0 : index
    %c0_15 = arith.constant 0 : index
    %49 = vector.load %arg3[%c0_14, %c0_15] : memref<64x18xf32, #tpu.memory_space<vmem>>, vector<64x18xf32>
    %cst_16 = arith.constant dense<0.000000e+00> : vector<8x18xf32>
    %50 = tpu.matmul %48, %49, %cst_16 {dimension_numbers = #tpu.dot_dimension_numbers<[1], [0], [0], [1], [0, 0, 1, 1], [], []>} : vector<8x64xf32>, vector<64x18xf32>, vector<8x18xf32> -> vector<8x18xf32>
    %51 = vector.extract_strided_slice %50 {offsets = [0, 0], sizes = [8, 16], strides = [1, 1]} : vector<8x18xf32> to vector<8x16xf32>
    %52 = tpu.transpose %51, [1, 0] : vector<8x16xf32> -> vector<16x8xf32>
    %53 = vector.extract_strided_slice %52 {offsets = [0, 0], sizes = [8, 8], strides = [1, 1]} : vector<16x8xf32> to vector<8x8xf32>
    %54 = vector.extract_strided_slice %52 {offsets = [8, 0], sizes = [8, 8], strides = [1, 1]} : vector<16x8xf32> to vector<8x8xf32>
    %55 = vector.extract_strided_slice %50 {offsets = [0, 16], sizes = [8, 2], strides = [1, 1]} : vector<8x18xf32> to vector<8x2xf32>
    %cst_17 = arith.constant 0.000000e+00 : f32
    %56 = vector.broadcast %cst_17 : f32 to vector<8x64xf32>
    %57 = vector.extract_strided_slice %2 {offsets = [15, 0], sizes = [1, 64], strides = [1, 1]} : vector<18x64xf32> to vector<1x64xf32>
    %58 = vector.broadcast %57 : vector<1x64xf32> to vector<8x64xf32>
    %59 = arith.addf %56, %58 : vector<8x64xf32>
    %60 = vector.extract_strided_slice %55 {offsets = [0, 0], sizes = [8, 1], strides = [1, 1]} : vector<8x2xf32> to vector<8x1xf32>
    %61 = vector.extract_strided_slice %2 {offsets = [4, 0], sizes = [1, 64], strides = [1, 1]} : vector<18x64xf32> to vector<1x64xf32>
    %62 = vector.broadcast %60 : vector<8x1xf32> to vector<8x64xf32>
    %63 = vector.broadcast %61 : vector<1x64xf32> to vector<8x64xf32>
    %64 = arith.mulf %62, %63 : vector<8x64xf32>
    %65 = arith.addf %59, %64 : vector<8x64xf32>
    %66 = vector.extract_strided_slice %55 {offsets = [0, 1], sizes = [8, 1], strides = [1, 1]} : vector<8x2xf32> to vector<8x1xf32>
    %67 = vector.extract_strided_slice %2 {offsets = [5, 0], sizes = [1, 64], strides = [1, 1]} : vector<18x64xf32> to vector<1x64xf32>
    %68 = vector.broadcast %66 : vector<8x1xf32> to vector<8x64xf32>
    %69 = vector.broadcast %67 : vector<1x64xf32> to vector<8x64xf32>
    %70 = arith.mulf %68, %69 : vector<8x64xf32>
    %71 = arith.addf %65, %70 : vector<8x64xf32>
    %cst_18 = arith.constant 0.000000e+00 : f32
    %72 = vector.broadcast %cst_18 : f32 to vector<8x64xf32>
    %73 = arith.maximumf %71, %72 : vector<8x64xf32>
    %74 = vector.broadcast %cst_18 : f32 to vector<8x64xf32>
    %75 = arith.subf %71, %74 : vector<8x64xf32>
    %76 = arith.cmpf one, %75, %75 : vector<8x64xf32>
    %77 = vector.broadcast %cst_18 : f32 to vector<8x64xf32>
    %78 = arith.addf %71, %77 : vector<8x64xf32>
    %79 = math.absf %75 : vector<8x64xf32>
    %cst_19 = arith.constant 0.000000e+00 : f32
    %80 = vector.broadcast %cst_19 : f32 to vector<8x64xf32>
    %81 = arith.subf %80, %79 : vector<8x64xf32>
    %82 = math.exp %81 : vector<8x64xf32>
    %83 = math.log1p %82 : vector<8x64xf32>
    %84 = arith.addf %73, %83 : vector<8x64xf32>
    %85 = arith.select %76, %78, %84 : vector<8x64xi1>, vector<8x64xf32>
    %86 = vector.extract_strided_slice %2 {offsets = [6, 0], sizes = [8, 64], strides = [1, 1]} : vector<18x64xf32> to vector<8x64xf32>
    %87 = arith.mulf %85, %48 : vector<8x64xf32>
    %cst_20 = arith.constant 0.000000e+00 : f32
    %88 = vector.broadcast %cst_20 : f32 to vector<8x64xf32>
    %89 = vector.extract_strided_slice %85 {offsets = [0, 0], sizes = [1, 64], strides = [1, 1]} : vector<8x64xf32> to vector<1x64xf32>
    %90 = vector.broadcast %89 : vector<1x64xf32> to vector<8x64xf32>
    %91 = arith.mulf %90, %86 : vector<8x64xf32>
    %92 = math.exp %91 : vector<8x64xf32>
    %93 = vector.extract_strided_slice %53 {offsets = [0, 0], sizes = [8, 1], strides = [1, 1]} : vector<8x8xf32> to vector<8x1xf32>
    %94 = vector.extract_strided_slice %87 {offsets = [0, 0], sizes = [1, 64], strides = [1, 1]} : vector<8x64xf32> to vector<1x64xf32>
    %95 = vector.broadcast %93 : vector<8x1xf32> to vector<8x64xf32>
    %96 = vector.broadcast %94 : vector<1x64xf32> to vector<8x64xf32>
    %97 = arith.mulf %95, %96 : vector<8x64xf32>
    %98 = arith.mulf %92, %88 : vector<8x64xf32>
    %99 = arith.addf %98, %97 : vector<8x64xf32>
    %100 = vector.extract_strided_slice %54 {offsets = [0, 0], sizes = [8, 1], strides = [1, 1]} : vector<8x8xf32> to vector<8x1xf32>
    %101 = vector.broadcast %100 : vector<8x1xf32> to vector<8x64xf32>
    %102 = arith.mulf %99, %101 : vector<8x64xf32>
    %cst_21 = arith.constant dense<0.000000e+00> : vector<64xf32>
    %103 = vector.multi_reduction <add>, %102, %cst_21 [0] : vector<8x64xf32> to vector<64xf32>
    %104 = vector.shape_cast %103 : vector<64xf32> to vector<1x64xf32>
    %105 = vector.extract_strided_slice %85 {offsets = [1, 0], sizes = [1, 64], strides = [1, 1]} : vector<8x64xf32> to vector<1x64xf32>
    %106 = vector.broadcast %105 : vector<1x64xf32> to vector<8x64xf32>
    %107 = arith.mulf %106, %86 : vector<8x64xf32>
    %108 = math.exp %107 : vector<8x64xf32>
    %109 = vector.extract_strided_slice %53 {offsets = [0, 1], sizes = [8, 1], strides = [1, 1]} : vector<8x8xf32> to vector<8x1xf32>
    %110 = vector.extract_strided_slice %87 {offsets = [1, 0], sizes = [1, 64], strides = [1, 1]} : vector<8x64xf32> to vector<1x64xf32>
    %111 = vector.broadcast %109 : vector<8x1xf32> to vector<8x64xf32>
    %112 = vector.broadcast %110 : vector<1x64xf32> to vector<8x64xf32>
    %113 = arith.mulf %111, %112 : vector<8x64xf32>
    %114 = arith.mulf %108, %99 : vector<8x64xf32>
    %115 = arith.addf %114, %113 : vector<8x64xf32>
    %116 = vector.extract_strided_slice %54 {offsets = [0, 1], sizes = [8, 1], strides = [1, 1]} : vector<8x8xf32> to vector<8x1xf32>
    %117 = vector.broadcast %116 : vector<8x1xf32> to vector<8x64xf32>
    %118 = arith.mulf %115, %117 : vector<8x64xf32>
    %cst_22 = arith.constant dense<0.000000e+00> : vector<64xf32>
    %119 = vector.multi_reduction <add>, %118, %cst_22 [0] : vector<8x64xf32> to vector<64xf32>
    %120 = vector.shape_cast %119 : vector<64xf32> to vector<1x64xf32>
    %121 = vector.extract_strided_slice %85 {offsets = [2, 0], sizes = [1, 64], strides = [1, 1]} : vector<8x64xf32> to vector<1x64xf32>
    %122 = vector.broadcast %121 : vector<1x64xf32> to vector<8x64xf32>
    %123 = arith.mulf %122, %86 : vector<8x64xf32>
    %124 = math.exp %123 : vector<8x64xf32>
    %125 = vector.extract_strided_slice %53 {offsets = [0, 2], sizes = [8, 1], strides = [1, 1]} : vector<8x8xf32> to vector<8x1xf32>
    %126 = vector.extract_strided_slice %87 {offsets = [2, 0], sizes = [1, 64], strides = [1, 1]} : vector<8x64xf32> to vector<1x64xf32>
    %127 = vector.broadcast %125 : vector<8x1xf32> to vector<8x64xf32>
    %128 = vector.broadcast %126 : vector<1x64xf32> to vector<8x64xf32>
    %129 = arith.mulf %127, %128 : vector<8x64xf32>
    %130 = arith.mulf %124, %115 : vector<8x64xf32>
    %131 = arith.addf %130, %129 : vector<8x64xf32>
    %132 = vector.extract_strided_slice %54 {offsets = [0, 2], sizes = [8, 1], strides = [1, 1]} : vector<8x8xf32> to vector<8x1xf32>
    %133 = vector.broadcast %132 : vector<8x1xf32> to vector<8x64xf32>
    %134 = arith.mulf %131, %133 : vector<8x64xf32>
    %cst_23 = arith.constant dense<0.000000e+00> : vector<64xf32>
    %135 = vector.multi_reduction <add>, %134, %cst_23 [0] : vector<8x64xf32> to vector<64xf32>
    %136 = vector.shape_cast %135 : vector<64xf32> to vector<1x64xf32>
    %137 = vector.extract_strided_slice %85 {offsets = [3, 0], sizes = [1, 64], strides = [1, 1]} : vector<8x64xf32> to vector<1x64xf32>
    %138 = vector.broadcast %137 : vector<1x64xf32> to vector<8x64xf32>
    %139 = arith.mulf %138, %86 : vector<8x64xf32>
    %140 = math.exp %139 : vector<8x64xf32>
    %141 = vector.extract_strided_slice %53 {offsets = [0, 3], sizes = [8, 1], strides = [1, 1]} : vector<8x8xf32> to vector<8x1xf32>
    %142 = vector.extract_strided_slice %87 {offsets = [3, 0], sizes = [1, 64], strides = [1, 1]} : vector<8x64xf32> to vector<1x64xf32>
    %143 = vector.broadcast %141 : vector<8x1xf32> to vector<8x64xf32>
    %144 = vector.broadcast %142 : vector<1x64xf32> to vector<8x64xf32>
    %145 = arith.mulf %143, %144 : vector<8x64xf32>
    %146 = arith.mulf %140, %131 : vector<8x64xf32>
    %147 = arith.addf %146, %145 : vector<8x64xf32>
    %148 = vector.extract_strided_slice %54 {offsets = [0, 3], sizes = [8, 1], strides = [1, 1]} : vector<8x8xf32> to vector<8x1xf32>
    %149 = vector.broadcast %148 : vector<8x1xf32> to vector<8x64xf32>
    %150 = arith.mulf %147, %149 : vector<8x64xf32>
    %cst_24 = arith.constant dense<0.000000e+00> : vector<64xf32>
    %151 = vector.multi_reduction <add>, %150, %cst_24 [0] : vector<8x64xf32> to vector<64xf32>
    %152 = vector.shape_cast %151 : vector<64xf32> to vector<1x64xf32>
    %153 = vector.extract_strided_slice %85 {offsets = [4, 0], sizes = [1, 64], strides = [1, 1]} : vector<8x64xf32> to vector<1x64xf32>
    %154 = vector.broadcast %153 : vector<1x64xf32> to vector<8x64xf32>
    %155 = arith.mulf %154, %86 : vector<8x64xf32>
    %156 = math.exp %155 : vector<8x64xf32>
    %157 = vector.extract_strided_slice %53 {offsets = [0, 4], sizes = [8, 1], strides = [1, 1]} : vector<8x8xf32> to vector<8x1xf32>
    %158 = vector.extract_strided_slice %87 {offsets = [4, 0], sizes = [1, 64], strides = [1, 1]} : vector<8x64xf32> to vector<1x64xf32>
    %159 = vector.broadcast %157 : vector<8x1xf32> to vector<8x64xf32>
    %160 = vector.broadcast %158 : vector<1x64xf32> to vector<8x64xf32>
    %161 = arith.mulf %159, %160 : vector<8x64xf32>
    %162 = arith.mulf %156, %147 : vector<8x64xf32>
    %163 = arith.addf %162, %161 : vector<8x64xf32>
    %164 = vector.extract_strided_slice %54 {offsets = [0, 4], sizes = [8, 1], strides = [1, 1]} : vector<8x8xf32> to vector<8x1xf32>
    %165 = vector.broadcast %164 : vector<8x1xf32> to vector<8x64xf32>
    %166 = arith.mulf %163, %165 : vector<8x64xf32>
    %cst_25 = arith.constant dense<0.000000e+00> : vector<64xf32>
    %167 = vector.multi_reduction <add>, %166, %cst_25 [0] : vector<8x64xf32> to vector<64xf32>
    %168 = vector.shape_cast %167 : vector<64xf32> to vector<1x64xf32>
    %169 = vector.extract_strided_slice %85 {offsets = [5, 0], sizes = [1, 64], strides = [1, 1]} : vector<8x64xf32> to vector<1x64xf32>
    %170 = vector.broadcast %169 : vector<1x64xf32> to vector<8x64xf32>
    %171 = arith.mulf %170, %86 : vector<8x64xf32>
    %172 = math.exp %171 : vector<8x64xf32>
    %173 = vector.extract_strided_slice %53 {offsets = [0, 5], sizes = [8, 1], strides = [1, 1]} : vector<8x8xf32> to vector<8x1xf32>
    %174 = vector.extract_strided_slice %87 {offsets = [5, 0], sizes = [1, 64], strides = [1, 1]} : vector<8x64xf32> to vector<1x64xf32>
    %175 = vector.broadcast %173 : vector<8x1xf32> to vector<8x64xf32>
    %176 = vector.broadcast %174 : vector<1x64xf32> to vector<8x64xf32>
    %177 = arith.mulf %175, %176 : vector<8x64xf32>
    %178 = arith.mulf %172, %163 : vector<8x64xf32>
    %179 = arith.addf %178, %177 : vector<8x64xf32>
    %180 = vector.extract_strided_slice %54 {offsets = [0, 5], sizes = [8, 1], strides = [1, 1]} : vector<8x8xf32> to vector<8x1xf32>
    %181 = vector.broadcast %180 : vector<8x1xf32> to vector<8x64xf32>
    %182 = arith.mulf %179, %181 : vector<8x64xf32>
    %cst_26 = arith.constant dense<0.000000e+00> : vector<64xf32>
    %183 = vector.multi_reduction <add>, %182, %cst_26 [0] : vector<8x64xf32> to vector<64xf32>
    %184 = vector.shape_cast %183 : vector<64xf32> to vector<1x64xf32>
    %185 = vector.extract_strided_slice %85 {offsets = [6, 0], sizes = [1, 64], strides = [1, 1]} : vector<8x64xf32> to vector<1x64xf32>
    %186 = vector.broadcast %185 : vector<1x64xf32> to vector<8x64xf32>
    %187 = arith.mulf %186, %86 : vector<8x64xf32>
    %188 = math.exp %187 : vector<8x64xf32>
    %189 = vector.extract_strided_slice %53 {offsets = [0, 6], sizes = [8, 1], strides = [1, 1]} : vector<8x8xf32> to vector<8x1xf32>
    %190 = vector.extract_strided_slice %87 {offsets = [6, 0], sizes = [1, 64], strides = [1, 1]} : vector<8x64xf32> to vector<1x64xf32>
    %191 = vector.broadcast %189 : vector<8x1xf32> to vector<8x64xf32>
    %192 = vector.broadcast %190 : vector<1x64xf32> to vector<8x64xf32>
    %193 = arith.mulf %191, %192 : vector<8x64xf32>
    %194 = arith.mulf %188, %179 : vector<8x64xf32>
    %195 = arith.addf %194, %193 : vector<8x64xf32>
    %196 = vector.extract_strided_slice %54 {offsets = [0, 6], sizes = [8, 1], strides = [1, 1]} : vector<8x8xf32> to vector<8x1xf32>
    %197 = vector.broadcast %196 : vector<8x1xf32> to vector<8x64xf32>
    %198 = arith.mulf %195, %197 : vector<8x64xf32>
    %cst_27 = arith.constant dense<0.000000e+00> : vector<64xf32>
    %199 = vector.multi_reduction <add>, %198, %cst_27 [0] : vector<8x64xf32> to vector<64xf32>
    %200 = vector.shape_cast %199 : vector<64xf32> to vector<1x64xf32>
    %201 = vector.extract_strided_slice %85 {offsets = [7, 0], sizes = [1, 64], strides = [1, 1]} : vector<8x64xf32> to vector<1x64xf32>
    %202 = vector.broadcast %201 : vector<1x64xf32> to vector<8x64xf32>
    %203 = arith.mulf %202, %86 : vector<8x64xf32>
    %204 = math.exp %203 : vector<8x64xf32>
    %205 = vector.extract_strided_slice %53 {offsets = [0, 7], sizes = [8, 1], strides = [1, 1]} : vector<8x8xf32> to vector<8x1xf32>
    %206 = vector.extract_strided_slice %87 {offsets = [7, 0], sizes = [1, 64], strides = [1, 1]} : vector<8x64xf32> to vector<1x64xf32>
    %207 = vector.broadcast %205 : vector<8x1xf32> to vector<8x64xf32>
    %208 = vector.broadcast %206 : vector<1x64xf32> to vector<8x64xf32>
    %209 = arith.mulf %207, %208 : vector<8x64xf32>
    %210 = arith.mulf %204, %195 : vector<8x64xf32>
    %211 = arith.addf %210, %209 : vector<8x64xf32>
    %212 = vector.extract_strided_slice %54 {offsets = [0, 7], sizes = [8, 1], strides = [1, 1]} : vector<8x8xf32> to vector<8x1xf32>
    %213 = vector.broadcast %212 : vector<8x1xf32> to vector<8x64xf32>
    %214 = arith.mulf %211, %213 : vector<8x64xf32>
    %cst_28 = arith.constant dense<0.000000e+00> : vector<64xf32>
    %215 = vector.multi_reduction <add>, %214, %cst_28 [0] : vector<8x64xf32> to vector<64xf32>
    %216 = vector.shape_cast %215 : vector<64xf32> to vector<1x64xf32>
    %217 = tpu.concatenate %104, %120, %136, %152, %168, %184, %200, %216 in 0 : vector<1x64xf32>, vector<1x64xf32>, vector<1x64xf32>, vector<1x64xf32>, vector<1x64xf32>, vector<1x64xf32>, vector<1x64xf32>, vector<1x64xf32> -> vector<8x64xf32>
    %218 = vector.extract_strided_slice %2 {offsets = [16, 0], sizes = [1, 64], strides = [1, 1]} : vector<18x64xf32> to vector<1x64xf32>
    %219 = vector.broadcast %218 : vector<1x64xf32> to vector<8x64xf32>
    %220 = arith.mulf %48, %219 : vector<8x64xf32>
    %221 = arith.addf %217, %220 : vector<8x64xf32>
    %222 = arith.negf %6 : vector<8x64xf32>
    %223 = math.exp %222 : vector<8x64xf32>
    %cst_29 = arith.constant 1.000000e+00 : f32
    %224 = vector.broadcast %cst_29 : f32 to vector<8x64xf32>
    %225 = arith.addf %224, %223 : vector<8x64xf32>
    %226 = arith.divf %224, %225 : vector<8x64xf32>
    %227 = arith.mulf %6, %226 : vector<8x64xf32>
    %228 = arith.mulf %221, %227 : vector<8x64xf32>
    %c0_30 = arith.constant 0 : index
    %c0_31 = arith.constant 0 : index
    %229 = vector.load %arg4[%c0_30, %c0_31] : memref<64x32xf32, #tpu.memory_space<vmem>>, vector<64x32xf32>
    %cst_32 = arith.constant dense<0.000000e+00> : vector<8x32xf32>
    %230 = tpu.matmul %228, %229, %cst_32 {dimension_numbers = #tpu.dot_dimension_numbers<[1], [0], [0], [1], [0, 0, 1, 1], [], []>} : vector<8x64xf32>, vector<64x32xf32>, vector<8x32xf32> -> vector<8x32xf32>
    %231 = vector.extract_strided_slice %2 {offsets = [17, 0], sizes = [1, 32], strides = [1, 1]} : vector<18x64xf32> to vector<1x32xf32>
    %232 = vector.broadcast %231 : vector<1x32xf32> to vector<8x32xf32>
    %233 = arith.addf %230, %232 : vector<8x32xf32>
    %c0_33 = arith.constant 0 : index
    %c0_34 = arith.constant 0 : index
    %c0_35 = arith.constant 0 : index
    %234 = vector.load %arg6[%c0_33, %c0_34, %c0_35] : memref<1x8x32xf32, #tpu.memory_space<vmem>>, vector<1x8x32xf32>
    %235 = vector.shape_cast %234 : vector<1x8x32xf32> to vector<8x32xf32>
    %236 = vector.shape_cast %233 : vector<8x32xf32> to vector<1x8x32xf32>
    tpu.vector_store %arg6[%c0_33, %c0_34, %c0_35], %236 {strides = array<i32>} : memref<1x8x32xf32, #tpu.memory_space<vmem>>, vector<1x8x32xf32>,
    return
  }
  func.func @transform_0(%arg0: i32) -> (i32, i32, i32) {
    %c0_i32 = arith.constant 0 : i32
    %c0_i32_0 = arith.constant 0 : i32
    %c0_i32_1 = arith.constant 0 : i32
    return %arg0, %c0_i32, %c0_i32_0 : i32, i32, i32
  }
  func.func @transform_1(%arg0: i32) -> (i32, i32) {
    %c0_i32 = arith.constant 0 : i32
    %c0_i32_0 = arith.constant 0 : i32
    %c0_i32_1 = arith.constant 0 : i32
    return %c0_i32, %c0_i32_0 : i32, i32
  }
  func.func @transform_2(%arg0: i32) -> (i32, i32) {
    %c0_i32 = arith.constant 0 : i32
    %c0_i32_0 = arith.constant 0 : i32
    %c0_i32_1 = arith.constant 0 : i32
    return %c0_i32, %c0_i32_0 : i32, i32
  }
  func.func @transform_3(%arg0: i32) -> (i32, i32) {
    %c0_i32 = arith.constant 0 : i32
    %c0_i32_0 = arith.constant 0 : i32
    %c0_i32_1 = arith.constant 0 : i32
    return %c0_i32, %c0_i32_0 : i32, i32
  }
  func.func @transform_4(%arg0: i32) -> (i32, i32) {
    %c0_i32 = arith.constant 0 : i32
    %c0_i32_0 = arith.constant 0 : i32
    %c0_i32_1 = arith.constant 0 : i32
    return %c0_i32, %c0_i32_0 : i32, i32
  }
  func.func @transform_5(%arg0: i32) -> (i32, i32, i32) {
    %c0_i32 = arith.constant 0 : i32
    %c0_i32_0 = arith.constant 0 : i32
    %c0_i32_1 = arith.constant 0 : i32
    return %arg0, %c0_i32, %c0_i32_0 : i32, i32, i32
  }
}

</mosaic_0001>

<llo_original>
// kernel: tpu_custom_call.1
$region0: #{tpu_custom_call.1}
  #allocation0 [shape = 'u32[]', space=smem, size = 0x4, offset = 0x4, fixed_abs, tag = 'smem constant byte address 0x4 - core index']
  #allocation1 [shape = 'u32[144,128]{1,0:T(1,128)}', space=vmem, size = 0x12000, scoped, tag = 'internal scratch']
  %s0 = inlined_call_operand.vmem [shape: f32[2,8,32], index: 0, kind: input, shape index: {}]
  %s1 = inlined_call_operand.vmem [shape: f32[32,128], index: 1, kind: input, shape index: {}]
  %s2 = inlined_call_operand.vmem [shape: f32[64,18], index: 2, kind: input, shape index: {}]
  %s3 = inlined_call_operand.vmem [shape: f32[64,32], index: 3, kind: input, shape index: {}]
  %s4 = inlined_call_operand.vmem [shape: f32[18,64], index: 4, kind: input, shape index: {}]
  %s5 = inlined_call_operand.hbm [shape: f32[2,8,32], index: 5, kind: output, shape index: {}]
  %s6 = sld [smem:[#allocation0]]
  $region53: #{tpu_custom_call.1} parent=0
    _
  %s8 = ssub.s32 1, %s6
  %s9 = scalar_select 0, %s8, %s6
  $region1: #{tpu_custom_call.1} parent=0
    #allocation2 [shape = 'u8[8192]{0}', space=vmem, size = 0x2000, scoped, tag = 'output window, operand 0']
    #allocation3 [shape = 's32[2]{0}', space=sflag, size = 0x8, scoped, tag = 'scoped memory for tpu_custom_call.1']
    %10 = vsyncpa [#allocation3], 0
    %s11 = scalar_lea.sflag [#allocation3], 1
    %12 = vsyncpa %s11, 0
    loop: start=0, step=1, limit=4
    $region2: #{tpu_custom_call.1} parent=1 // loop_pre_header
      _
    $region3: #{tpu_custom_call.1} parent=1 // loop_header
      %s14 = sphi 0, %s18
      %p15 = scmp.ge.s32.totalorder %s14, 4
      %s24 = sphi 0, %s26
      %s27 = sphi 0, %s24
      %s28 = sphi 0, %s27
      %s44 = sphi 0, %s28
      %s48 = sphi 0, %s48
      %s50 = sphi 0, %s48
      %s51 = sphi 0, %s50
      %s65 = sphi 0, %s51
      %s69 = sphi 0, %s69
      %s71 = sphi 0, %s69
      %s72 = sphi 0, %s71
      %s86 = sphi 0, %s72
      %s90 = sphi 0, %s90
      %s92 = sphi 0, %s90
      %s93 = sphi 0, %s92
      %s107 = sphi 0, %s93
      %s111 = sphi 0, %s111
      %s113 = sphi 0, %s111
      %s114 = sphi 0, %s113
      %s128 = sphi 0, %s114
      %s134 = sphi 0, %s136
      %s137 = sphi 0, %s134
      %s138 = sphi 0, %s137
      %s154 = sphi 0, %s138
    $region4: #{tpu_custom_call.1} parent=1 // loop_header_branch
      %17 = sbr.rel (%p15) target = $region8
    $region5: #{tpu_custom_call.1} parent=1 // loop_body
      %s19 = ssub.s32 %s14, 1
      %s20 = ssub.s32 %s14, 2
      %s21 = sadd.s32 %s14, 1
      %s22 = ssub.s32 %s14, %s21
      %p23 = scmp.eq.s32.totalorder %s22, 0
      %s25 = sadd.s32 %s24, 1
      %s26 = scalar_select %p23, %s24, %s25
      %p29 = pneg %p23
      %p30 = scmp.eq.s32.totalorder %s14, 1
      %p31 = por %p29, %p30
      %p32 = scmp.ne.s32.totalorder %s24, %s27
      %p33 = scmp.eq.s32.totalorder %s14, 0
      %p34 = por %p32, %p33
      %p35 = scmp.ne.s32.totalorder %s24, %s27
      %p36 = scmp.eq.s32.totalorder %s19, 1
      %p37 = por %p35, %p36
      %p38 = scmp.ne.s32.totalorder %s27, %s28
      %p39 = scmp.eq.s32.totalorder %s19, 0
      %p40 = por %p38, %p39
      %p41 = scmp.ne.s32.totalorder %s27, %s28
      %p42 = scmp.eq.s32.totalorder %s20, 1
      %p43 = por %p41, %p42
      %p45 = scmp.ne.s32.totalorder %s28, %s44
      %p46 = scmp.eq.s32.totalorder %s20, 0
      %p47 = por %p45, %p46
      %s49 = sadd.s32 %s48, 1
      %p52 = scmp.eq.s32.totalorder %s14, 1
      %p53 = scmp.ne.s32.totalorder %s48, %s50
      %p54 = scmp.eq.s32.totalorder %s14, 0
      %p55 = por %p53, %p54
      %p56 = scmp.ne.s32.totalorder %s48, %s50
      %p57 = scmp.eq.s32.totalorder %s19, 1
      %p58 = por %p56, %p57
      %p59 = scmp.ne.s32.totalorder %s50, %s51
      %p60 = scmp.eq.s32.totalorder %s19, 0
      %p61 = por %p59, %p60
      %p62 = scmp.ne.s32.totalorder %s50, %s51
      %p63 = scmp.eq.s32.totalorder %s20, 1
      %p64 = por %p62, %p63
      %p66 = scmp.ne.s32.totalorder %s51, %s65
      %p67 = scmp.eq.s32.totalorder %s20, 0
      %p68 = por %p66, %p67
      %s70 = sadd.s32 %s69, 1
      %p73 = scmp.eq.s32.totalorder %s14, 1
      %p74 = scmp.ne.s32.totalorder %s69, %s71
      %p75 = scmp.eq.s32.totalorder %s14, 0
      %p76 = por %p74, %p75
      %p77 = scmp.ne.s32.totalorder %s69, %s71
      %p78 = scmp.eq.s32.totalorder %s19, 1
      %p79 = por %p77, %p78
      %p80 = scmp.ne.s32.totalorder %s71, %s72
      %p81 = scmp.eq.s32.totalorder %s19, 0
      %p82 = por %p80, %p81
      %p83 = scmp.ne.s32.totalorder %s71, %s72
      %p84 = scmp.eq.s32.totalorder %s20, 1
      %p85 = por %p83, %p84
      %p87 = scmp.ne.s32.totalorder %s72, %s86
      %p88 = scmp.eq.s32.totalorder %s20, 0
      %p89 = por %p87, %p88
      %s91 = sadd.s32 %s90, 1
      %p94 = scmp.eq.s32.totalorder %s14, 1
      %p95 = scmp.ne.s32.totalorder %s90, %s92
      %p96 = scmp.eq.s32.totalorder %s14, 0
      %p97 = por %p95, %p96
      %p98 = scmp.ne.s32.totalorder %s90, %s92
      %p99 = scmp.eq.s32.totalorder %s19, 1
      %p100 = por %p98, %p99
      %p101 = scmp.ne.s32.totalorder %s92, %s93
      %p102 = scmp.eq.s32.totalorder %s19, 0
      %p103 = por %p101, %p102
      %p104 = scmp.ne.s32.totalorder %s92, %s93
      %p105 = scmp.eq.s32.totalorder %s20, 1
      %p106 = por %p104, %p105
      %p108 = scmp.ne.s32.totalorder %s93, %s107
      %p109 = scmp.eq.s32.totalorder %s20, 0
      %p110 = por %p108, %p109
      %s112 = sadd.s32 %s111, 1
      %p115 = scmp.eq.s32.totalorder %s14, 1
      %p116 = scmp.ne.s32.totalorder %s111, %s113
      %p117 = scmp.eq.s32.totalorder %s14, 0
      %p118 = por %p116, %p117
      %p119 = scmp.ne.s32.totalorder %s111, %s113
      %p120 = scmp.eq.s32.totalorder %s19, 1
      %p121 = por %p119, %p120
      %p122 = scmp.ne.s32.totalorder %s113, %s114
      %p123 = scmp.eq.s32.totalorder %s19, 0
      %p124 = por %p122, %p123
      %p125 = scmp.ne.s32.totalorder %s113, %s114
      %p126 = scmp.eq.s32.totalorder %s20, 1
      %p127 = por %p125, %p126
      %p129 = scmp.ne.s32.totalorder %s114, %s128
      %p130 = scmp.eq.s32.totalorder %s20, 0
      %p131 = por %p129, %p130
      %s132 = ssub.s32 %s14, %s21
      %p133 = scmp.eq.s32.totalorder %s132, 0
      %s135 = sadd.s32 %s134, 1
      %s136 = scalar_select %p133, %s134, %s135
      %p139 = pneg %p133
      %p140 = scmp.eq.s32.totalorder %s14, 1
      %p141 = por %p139, %p140
      %p142 = scmp.ne.s32.totalorder %s134, %s137
      %p143 = scmp.eq.s32.totalorder %s14, 0
      %p144 = por %p142, %p143
      %p145 = scmp.ne.s32.totalorder %s134, %s137
      %p146 = scmp.eq.s32.totalorder %s19, 1
      %p147 = por %p145, %p146
      %p148 = scmp.ne.s32.totalorder %s137, %s138
      %p149 = scmp.eq.s32.totalorder %s19, 0
      %p150 = por %p148, %p149
      %p151 = scmp.ne.s32.totalorder %s137, %s138
      %p152 = scmp.eq.s32.totalorder %s20, 1
      %p153 = por %p151, %p152
      %p155 = scmp.ne.s32.totalorder %s138, %s154
      %p156 = scmp.eq.s32.totalorder %s20, 0
      %p157 = por %p155, %p156
      %p158 = scmp.le.s32.totalorder 1, %s14
      %p159 = scmp.lt.s32.totalorder %s14, 3
      %p160 = pnand %p158, %p159
      %p161 = pneg %p160
      // Predicated region
      $region9: #{tpu_custom_call.1} parent=5 // pred_check
        _
      $region10: #{tpu_custom_call.1} parent=5 // pred_check_branch
        %163 = sbr.rel (%p160) target = $region12
      $region11: #{tpu_custom_call.1} parent=5 // pred_region
        %s164 = ssub.s32 %s14, 1
        // Predicated region
        $region13: #{tpu_custom_call.1} parent=11 // pred_check
          %p165 = pneg %p61
        $region14: #{tpu_custom_call.1} parent=11 // pred_check_branch
          %167 = sbr.rel (%p165) target = $region16
        $region15: #{tpu_custom_call.1} parent=11 // pred_region
          _
        $region16: #{tpu_custom_call.1} parent=11 // pred_fallthru
          _
        // Predicated region
        $region17: #{tpu_custom_call.1} parent=11 // pred_check
          %p168 = pneg %p82
        $region18: #{tpu_custom_call.1} parent=11 // pred_check_branch
          %170 = sbr.rel (%p168) target = $region20
        $region19: #{tpu_custom_call.1} parent=11 // pred_region
          _
        $region20: #{tpu_custom_call.1} parent=11 // pred_fallthru
          _
        // Predicated region
        $region21: #{tpu_custom_call.1} parent=11 // pred_check
          %p171 = pneg %p103
        $region22: #{tpu_custom_call.1} parent=11 // pred_check_branch
          %173 = sbr.rel (%p171) target = $region24
        $region23: #{tpu_custom_call.1} parent=11 // pred_region
          _
        $region24: #{tpu_custom_call.1} parent=11 // pred_fallthru
          _
        // Predicated region
        $region25: #{tpu_custom_call.1} parent=11 // pred_check
          %p174 = pneg %p124
        $region26: #{tpu_custom_call.1} parent=11 // pred_check_branch
          %176 = sbr.rel (%p174) target = $region28
        $region27: #{tpu_custom_call.1} parent=11 // pred_region
          _
        $region28: #{tpu_custom_call.1} parent=11 // pred_fallthru
          _
      $region12: #{tpu_custom_call.1} parent=5 // pred_fallthru
        _
      %p177 = scmp.lt.s32.totalorder %s14, 2
      // Predicated region
      $region29: #{tpu_custom_call.1} parent=5 // pred_check
        %p178 = pneg %p177
      $region30: #{tpu_custom_call.1} parent=5 // pred_check_branch
        %180 = sbr.rel (%p178) target = $region32
      $region31: #{tpu_custom_call.1} parent=5 // pred_region
        // Predicated region
        $region33: #{tpu_custom_call.1} parent=31 // pred_check
          %p181 = pneg %p34
        $region34: #{tpu_custom_call.1} parent=31 // pred_check_branch
          %183 = sbr.rel (%p181) target = $region36
        $region35: #{tpu_custom_call.1} parent=31 // pred_region
          %p184 = scmp.lt.s32.totalorder %s14, 1
          %s185 = scalar_select %p184, %s14, 1
          %s186 = smul.addr %s185, 8
          %s187 = scalar_lea.vmem %s0, %s186
        $region36: #{tpu_custom_call.1} parent=31 // pred_fallthru
          _
      $region32: #{tpu_custom_call.1} parent=5 // pred_fallthru
        _
      %p188 = scmp.le.s32.totalorder 1, %s14
      %p189 = scmp.lt.s32.totalorder %s14, 3
      %p190 = pnand %p188, %p189
      %p191 = pneg %p190
      // Predicated region
      $region37: #{tpu_custom_call.1} parent=5 // pred_check
        _
      $region38: #{tpu_custom_call.1} parent=5 // pred_check_branch
        %193 = sbr.rel (%p190) target = $region40
      $region39: #{tpu_custom_call.1} parent=5 // pred_region
        %s194 = ssub.s32 %s14, 1
        %p195 = scmp.lt.s32.totalorder %s19, 1
        %s196 = scalar_select %p195, %s19, 1
        %s197 = smul.addr %s196, 8
        %s198 = scalar_lea.vmem %s0, %s197
        %p199 = pneg %p40
        %p200 = pneg %p37
        %p201 = pneg %p61
        %p202 = pneg %p58
        %p203 = pneg %p82
        %p204 = pneg %p79
        %p205 = pneg %p103
        %p206 = pneg %p100
        %p207 = pneg %p124
        %p208 = pneg %p121
        %p209 = pneg %p150
        %p210 = pneg %p147
        %s211 = sand.u32 %s137, 1
        %s212 = scalar_lea.sflag [#allocation3], %s211
        %s213 = sand.u32 %s137, 1
        %s214 = smul.addr %s213, 8
        %s215 = scalar_lea.vmem [#allocation2], %s214
        %p216 = scmp.lt.s32.totalorder %s19, 1
        %s217 = scalar_select %p216, %s19, 1
        %s218 = smul.addr %s217, 8
        %s219 = scalar_lea.vmem %s0, %s218
        %v220 = vld [vmem:[%s219] sm:$0xff]
        %v221 = vld [vmem:[%s4] sm:$0xff]
        %v222 = vld [vmem:[%s4 + $0x8] sm:$0xff]
        %v223 = vld [vmem:[%s4 + $0x10] sm:$0x3]
        %v224 = vld [vmem:[%s1] sm:$0xff]
        %v225 = vld [vmem:[%s1 + $0x8] sm:$0xff]
        %v226 = vld [vmem:[%s1 + $0x10] sm:$0xff]
        %v227 = vld [vmem:[%s1 + $0x18] sm:$0xff]
        %vm228 = vcmask 261120
        %v230 = vsel %vm228, %v220, 0
        %232 = vmatprep.subr.mxu0 0.0
        %233 = vmatpush1.msra.mxu0 0.0
        %234 = vmatprep.subr.mxu0 0.0
        %235 = vmatpush1.msra.mxu0 0.0
        %236 = vmatprep.subr.mxu0 0.0
        %237 = vmatpush1.msra.mxu0 0.0
        %238 = vmatprep.subr.mxu0 0.0
        %239 = vmatpush1.msra.mxu0 0.0
        %240 = vmatprep.subr.mxu0 0.0
        %241 = vmatpush1.msra.mxu0 0.0
        %242 = vmatprep.subr.mxu0 0.0
        %243 = vmatpush1.msra.mxu0 0.0
        %244 = vmatprep.subr.mxu0 0.0
        %245 = vmatpush1.msra.mxu0 0.0
        %246 = vmatprep.subr.mxu0 0.0
        %247 = vmatpush1.msra.mxu0 0.0
        %248 = vmatprep.subr.mxu0 0.0
        %249 = vmatpush1.msra.mxu0 0.0
        %250 = vmatprep.subr.mxu0 0.0
        %251 = vmatpush1.msra.mxu0 0.0
        %252 = vmatprep.subr.mxu0 0.0
        %253 = vmatpush1.msra.mxu0 0.0
        %254 = vmatprep.subr.mxu0 0.0
        %255 = vmatpush1.msra.mxu0 0.0
        %256 = vmatprep.subr.mxu0 0.0
        %257 = vmatpush1.msra.mxu0 %v227
        %258 = vmatprep.subr.mxu0 0.0
        %259 = vmatpush1.msra.mxu0 %v226
        %260 = vmatprep.subr.mxu0 0.0
        %261 = vmatpush1.msra.mxu0 %v225
        %262 = vmatprep.subr.mxu0 0.0
        %263 = vmatpush1.msra.mxu0 %v224
        %264 = vmatprep.subr.mxu0 0.0
        %265 = vmatpush2.msra.mxu0 0.0
        %266 = vmatprep.subr.mxu0 0.0
        %267 = vmatpush2.msra.mxu0 0.0
        %268 = vmatprep.subr.mxu0 0.0
        %269 = vmatpush2.msra.mxu0 0.0
        %270 = vmatprep.subr.mxu0 0.0
        %271 = vmatpush2.msra.mxu0 0.0
        %272 = vmatprep.subr.mxu0 0.0
        %273 = vmatpush2.msra.mxu0 0.0
        %274 = vmatprep.subr.mxu0 0.0
        %275 = vmatpush2.msra.mxu0 0.0
        %276 = vmatprep.subr.mxu0 0.0
        %277 = vmatpush2.msra.mxu0 0.0
        %278 = vmatprep.subr.mxu0 0.0
        %279 = vmatpush2.msra.mxu0 0.0
        %280 = vmatprep.subr.mxu0 0.0
        %281 = vmatpush2.msra.mxu0 0.0
        %282 = vmatprep.subr.mxu0 0.0
        %283 = vmatpush2.msra.mxu0 0.0
        %284 = vmatprep.subr.mxu0 0.0
        %285 = vmatpush2.msra.mxu0 0.0
        %286 = vmatprep.subr.mxu0 0.0
        %287 = vmatpush2.msra.mxu0 0.0
        %288 = vmatprep.subr.mxu0 0.0
        %289 = vmatpush2.msra.mxu0 0.0
        %290 = vmatprep.subr.mxu0 0.0
        %291 = vmatpush2.msra.mxu0 0.0
        %292 = vmatprep.subr.mxu0 0.0
        %293 = vmatpush2.msra.mxu0 0.0
        %294 = vmatprep.subr.mxu0 0.0
        %295 = vmatpush2.msra.mxu0 0.0
        %296 = vmatprep.mubr.f32.mxu0 0.0
        %297 = vmatmul.mubr.f32.gmra.mxu0 %v230
        %v298 = vpop.f32.mrf.mxu0
        %v299 = vadd.f32 0.0, %v298
        %v300 = vpop.f32.mrf.mxu0
        %301 = vdwg.mxu0
        %v302 = vlaneseq
        %v303 = vshrl.u32 %v302, 7
        %v304 = vlaneseq
        %v305 = vshrl.u32 %v304, 7
        %v306 = vsub.s32 6, %v305
        %v307 = vrot.slane %v222, %v306
        %v308 = vadd.f32 %v307, 0.0
        %vm309 = vcmp.ge.s32.totalorder %v303, 3
        %v310 = vrot.slane %v299, 5
        %v311 = vsel %vm309, %v310, 0.0
        %v312 = vlaneseq
        %v313 = vshrl.u32 %v312, 7
        %v314 = vsub.s32 0, %v313
        %v315 = vrot.slane %v221, %v314
        %v316 = vmul.f32 %v315, %v311
        %v317 = vadd.f32 %v308, %v316
        %vm318 = vcmp.ge.s32.totalorder %v303, 2
        %v319 = vrot.slane %v299, 6
        %v320 = vsel %vm318, %v319, 0.0
        %v321 = vlaneseq
        %v322 = vshrl.u32 %v321, 7
        %v323 = vsub.s32 1, %v322
        %v324 = vrot.slane %v221, %v323
        %v325 = vmul.f32 %v324, %v320
        %v326 = vadd.f32 %v317, %v325
        %vm327 = vcmp.ge.s32.totalorder %v303, 1
        %v328 = vrot.slane %v299, 7
        %v329 = vsel %vm327, %v328, 0.0
        %v330 = vlaneseq
        %v331 = vshrl.u32 %v330, 7
        %v332 = vsub.s32 2, %v331
        %v333 = vrot.slane %v221, %v332
        %v334 = vmul.f32 %v333, %v329
        %v335 = vadd.f32 %v326, %v334
        %v336 = vlaneseq
        %v337 = vshrl.u32 %v336, 7
        %v338 = vsub.s32 3, %v337
        %v339 = vrot.slane %v221, %v338
        %v340 = vmul.f32 %v339, %v299
        %v341 = vadd.f32 %v335, %v340
        %v342 = vxor.u32 %v341, 2147483648
        %v343 = vmul.f32 %v342, 1.442695
        %v344 = vpow.pop %v343
        %v345 = vadd.f32 %v344, 1.0
        %v346 = vrcp.pop %v345
        %v347 = vmul.f32 1.0, %v346
        %v348 = vmul.f32 %v341, %v347
        %v349 = vld [vmem:[%s2] sm:$0xff]
        %v350 = vld [vmem:[%s2 + $0x8] sm:$0xff]
        %v351 = vld [vmem:[%s2 + $0x10] sm:$0xff]
        %v352 = vld [vmem:[%s2 + $0x18] sm:$0xff]
        %v353 = vld [vmem:[%s2 + $0x20] sm:$0xff]
        %v354 = vld [vmem:[%s2 + $0x28] sm:$0xff]
        %v355 = vld [vmem:[%s2 + $0x30] sm:$0xff]
        %v356 = vld [vmem:[%s2 + $0x38] sm:$0xff]
        %vm357 = vcmask 523264
        %v359 = vsel %vm357, %v348, 0
        %361 = vmatprep.subr.mxu0 0.0
        %362 = vmatpush1.msra.mxu0 0.0
        %363 = vmatprep.subr.mxu0 0.0
        %364 = vmatpush1.msra.mxu0 0.0
        %365 = vmatprep.subr.mxu0 0.0
        %366 = vmatpush1.msra.mxu0 0.0
        %367 = vmatprep.subr.mxu0 0.0
        %368 = vmatpush1.msra.mxu0 0.0
        %369 = vmatprep.subr.mxu0 0.0
        %370 = vmatpush1.msra.mxu0 0.0
        %371 = vmatprep.subr.mxu0 0.0
        %372 = vmatpush1.msra.mxu0 0.0
        %373 = vmatprep.subr.mxu0 0.0
        %374 = vmatpush1.msra.mxu0 0.0
        %375 = vmatprep.subr.mxu0 0.0
        %376 = vmatpush1.msra.mxu0 0.0
        %377 = vmatprep.subr.mxu0 0.0
        %378 = vmatpush1.msra.mxu0 %v356
        %379 = vmatprep.subr.mxu0 0.0
        %380 = vmatpush1.msra.mxu0 %v355
        %381 = vmatprep.subr.mxu0 0.0
        %382 = vmatpush1.msra.mxu0 %v354
        %383 = vmatprep.subr.mxu0 0.0
        %384 = vmatpush1.msra.mxu0 %v353
        %385 = vmatprep.subr.mxu0 0.0
        %386 = vmatpush1.msra.mxu0 %v352
        %387 = vmatprep.subr.mxu0 0.0
        %388 = vmatpush1.msra.mxu0 %v351
        %389 = vmatprep.subr.mxu0 0.0
        %390 = vmatpush1.msra.mxu0 %v350
        %391 = vmatprep.subr.mxu0 0.0
        %392 = vmatpush1.msra.mxu0 %v349
        %393 = vmatprep.subr.mxu0 0.0
        %394 = vmatpush2.msra.mxu0 0.0
        %395 = vmatprep.subr.mxu0 0.0
        %396 = vmatpush2.msra.mxu0 0.0
        %397 = vmatprep.subr.mxu0 0.0
        %398 = vmatpush2.msra.mxu0 0.0
        %399 = vmatprep.subr.mxu0 0.0
        %400 = vmatpush2.msra.mxu0 0.0
        %401 = vmatprep.subr.mxu0 0.0
        %402 = vmatpush2.msra.mxu0 0.0
        %403 = vmatprep.subr.mxu0 0.0
        %404 = vmatpush2.msra.mxu0 0.0
        %405 = vmatprep.subr.mxu0 0.0
        %406 = vmatpush2.msra.mxu0 0.0
        %407 = vmatprep.subr.mxu0 0.0
        %408 = vmatpush2.msra.mxu0 0.0
        %409 = vmatprep.subr.mxu0 0.0
        %410 = vmatpush2.msra.mxu0 0.0
        %411 = vmatprep.subr.mxu0 0.0
        %412 = vmatpush2.msra.mxu0 0.0
        %413 = vmatprep.subr.mxu0 0.0
        %414 = vmatpush2.msra.mxu0 0.0
        %415 = vmatprep.subr.mxu0 0.0
        %416 = vmatpush2.msra.mxu0 0.0
        %417 = vmatprep.subr.mxu0 0.0
        %418 = vmatpush2.msra.mxu0 0.0
        %419 = vmatprep.subr.mxu0 0.0
        %420 = vmatpush2.msra.mxu0 0.0
        %421 = vmatprep.subr.mxu0 0.0
        %422 = vmatpush2.msra.mxu0 0.0
        %423 = vmatprep.subr.mxu0 0.0
        %424 = vmatpush2.msra.mxu0 0.0
        %425 = vmatprep.mubr.f32.mxu0 0.0
        %426 = vmatmul.mubr.f32.gmra.mxu0 %v359
        %v427 = vpop.f32.mrf.mxu0
        %v428 = vadd.f32 0.0, %v427
        %v429 = vpop.f32.mrf.mxu0
        %430 = vdwg.mxu0
        %431 = vxpose.xlu0.b32.start [1/16] %v428, 128
        %432 = vxpose.xlu0.b32.cont [2/16] 0.0, 128
        %433 = vxpose.xlu0.b32.cont [3/16] 0.0, 128
        %434 = vxpose.xlu0.b32.cont [4/16] 0.0, 128
        %435 = vxpose.xlu0.b32.cont [5/16] 0.0, 128
        %436 = vxpose.xlu0.b32.cont [6/16] 0.0, 128
        %437 = vxpose.xlu0.b32.cont [7/16] 0.0, 128
        %438 = vxpose.xlu0.b32.cont [8/16] 0.0, 128
        %439 = vxpose.xlu0.b32.cont [9/16] 0.0, 128
        %440 = vxpose.xlu0.b32.cont [10/16] 0.0, 128
        %441 = vxpose.xlu0.b32.cont [11/16] 0.0, 128
        %442 = vxpose.xlu0.b32.cont [12/16] 0.0, 128
        %443 = vxpose.xlu0.b32.cont [13/16] 0.0, 128
        %444 = vxpose.xlu0.b32.cont [14/16] 0.0, 128
        %445 = vxpose.xlu0.b32.cont [15/16] 0.0, 128
        %446 = vxpose.xlu0.b32.end [16/16] 0.0, 128
        %v447 = vpop.trf.xlu0
        %v448 = vpop.trf.xlu0
        %v449 = vpop.trf.xlu0
        %v450 = vpop.trf.xlu0
        %v451 = vpop.trf.xlu0
        %v452 = vpop.trf.xlu0
        %v453 = vpop.trf.xlu0
        %v454 = vpop.trf.xlu0
        %v455 = vpop.trf.xlu0
        %v456 = vpop.trf.xlu0
        %v457 = vpop.trf.xlu0
        %v458 = vpop.trf.xlu0
        %v459 = vpop.trf.xlu0
        %v460 = vpop.trf.xlu0
        %v461 = vpop.trf.xlu0
        %v462 = vpop.trf.xlu0
        %v463 = vlaneseq
        %v464 = vshrl.u32 %v463, 7
        %v465 = vsub.s32 7, %v464
        %v466 = vrot.slane %v222, %v465
        %v467 = vadd.f32 %v466, 0.0
        %469 = vset.pattern.permute.xlu0 16
        %470 = vperm.xlu0 %469, %v428
        %v471 = vpop.permute.xlu0 %470
        %v473 = vlaneseq
        %v474 = vshrl.u32 %v473, 7
        %v475 = vsub.s32 4, %v474
        %v476 = vrot.slane %v221, %v475
        %v477 = vmul.f32 %v471, %v476
        %v478 = vadd.f32 %v467, %v477
        %479 = vset.pattern.permute.xlu0 17
        %480 = vperm.xlu0 %479, %v428
        %v481 = vpop.permute.xlu0 %480
        %v483 = vlaneseq
        %v484 = vshrl.u32 %v483, 7
        %v485 = vsub.s32 5, %v484
        %v486 = vrot.slane %v221, %v485
        %v487 = vmul.f32 %v481, %v486
        %v488 = vadd.f32 %v478, %v487
        %v489 = vmax.f32 %v488, 0.0
        %vm490 = vcmp.ne.f32.partialorder %v488, %v488
        %v491 = vadd.f32 %v488, 0.0
        %v492 = vand.u32 2147483647, %v488
        %v493 = vsub.f32 0.0, %v492
        %v494 = vmul.f32 %v493, 1.442695
        %v495 = vpow.pop %v494
        %v496 = vadd.f32 %v495, 1.0
        %v497 = vlog2.pop %v496
        %v498 = vmul.f32 %v497, 0.6931472
        %v499 = vmul.f32 -0.5, %v495
        %v500 = vadd.f32 %v499, 1.0
        %v501 = vmul.f32 %v500, %v495
        %v502 = vand.u32 2147483647, %v495
        %vm503 = vcmp.lt.f32.partialorder %v502, 0.0004427343
        %v504 = vsel %vm503, %v501, %v498
        %v505 = vadd.f32 %v489, %v504
        %v506 = vsel %vm490, %v491, %v505
        %v507 = vmul.f32 %v506, %v348
        %v508 = vlaneseq
        %v509 = vshrl.u32 %v508, 7
        %v510 = vsub.s32 0, %v509
        %v511 = vrot.slane %v506, %v510
        %v512 = vmul.f32 %v511, %v221
        %v513 = vmul.f32 %v511, %v222
        %v514 = vmul.f32 %v512, 1.442695
        %v515 = vpow.pop %v514
        %v516 = vmul.f32 %v513, 1.442695
        %v517 = vpow.pop %v516
        %519 = vset.pattern.permute.xlu0 0
        %520 = vperm.xlu0 %519, %v447
        %v521 = vpop.permute.xlu0 %520
        %v523 = vlaneseq
        %v524 = vshrl.u32 %v523, 7
        %v525 = vsub.s32 0, %v524
        %v526 = vrot.slane %v507, %v525
        %v527 = vmul.f32 %v521, %v526
        %v528 = vmul.f32 %v515, 0.0
        %v529 = vmul.f32 %v517, 0.0
        %v531 = vrot.slane %v527, 2
        %v533 = vadd.f32 %v528, %v531
        %v534 = vadd.f32 %v529, %v531
        %536 = vset.pattern.permute.xlu0 0
        %537 = vperm.xlu0 %536, %v448
        %v538 = vpop.permute.xlu0 %537
        %v539 = vrot.slane %v538, 2
        %v541 = vmul.f32 %v533, %v539
        %v542 = vmul.f32 %v534, %v539
        %vm545 = vcmask 1041408
        %v546 = vrot.slane %v541, 6
        %v547 = vrot.slane %v542, 6
        %v548 = vsel %vm545, %v546, %v547
        %v550 = vsel %vm357, %v548, 0.0
        %v551 = vrot.slane %v550, 4
        %v552 = vadd.f32 %v550, %v551
        %v553 = vrot.slane %v552, 2
        %v554 = vadd.f32 %v552, %v553
        %v555 = vrot.slane %v554, 1
        %v556 = vadd.f32 %v554, %v555
        %v557 = vlaneseq
        %v558 = vshrl.u32 %v557, 7
        %v559 = vsub.s32 1, %v558
        %v560 = vrot.slane %v506, %v559
        %v561 = vmul.f32 %v560, %v221
        %v562 = vmul.f32 %v560, %v222
        %v563 = vmul.f32 %v561, 1.442695
        %v564 = vpow.pop %v563
        %v565 = vmul.f32 %v562, 1.442695
        %v566 = vpow.pop %v565
        %567 = vset.pattern.permute.xlu0 1
        %568 = vperm.xlu0 %567, %v447
        %v569 = vpop.permute.xlu0 %568
        %v571 = vlaneseq
        %v572 = vshrl.u32 %v571, 7
        %v573 = vsub.s32 1, %v572
        %v574 = vrot.slane %v507, %v573
        %v575 = vmul.f32 %v569, %v574
        %v576 = vmul.f32 %v564, %v533
        %v577 = vmul.f32 %v566, %v534
        %v579 = vrot.slane %v575, 2
        %v581 = vadd.f32 %v576, %v579
        %v582 = vadd.f32 %v577, %v579
        %583 = vset.pattern.permute.xlu0 1
        %584 = vperm.xlu0 %583, %v448
        %v585 = vpop.permute.xlu0 %584
        %v586 = vrot.slane %v585, 2
        %v588 = vmul.f32 %v581, %v586
        %v589 = vmul.f32 %v582, %v586
        %v592 = vrot.slane %v588, 6
        %v593 = vrot.slane %v589, 6
        %v594 = vsel %vm545, %v592, %v593
        %v596 = vsel %vm357, %v594, 0.0
        %v597 = vrot.slane %v596, 4
        %v598 = vadd.f32 %v596, %v597
        %v599 = vrot.slane %v598, 2
        %v600 = vadd.f32 %v598, %v599
        %v601 = vrot.slane %v600, 1
        %v602 = vadd.f32 %v600, %v601
        %v603 = vlaneseq
        %v604 = vshrl.u32 %v603, 7
        %v605 = vsub.s32 2, %v604
        %v606 = vrot.slane %v506, %v605
        %v607 = vmul.f32 %v606, %v221
        %v608 = vmul.f32 %v606, %v222
        %v609 = vmul.f32 %v607, 1.442695
        %v610 = vpow.pop %v609
        %v611 = vmul.f32 %v608, 1.442695
        %v612 = vpow.pop %v611
        %613 = vset.pattern.permute.xlu0 2
        %614 = vperm.xlu0 %613, %v447
        %v615 = vpop.permute.xlu0 %614
        %v617 = vlaneseq
        %v618 = vshrl.u32 %v617, 7
        %v619 = vsub.s32 2, %v618
        %v620 = vrot.slane %v507, %v619
        %v621 = vmul.f32 %v615, %v620
        %v622 = vmul.f32 %v610, %v581
        %v623 = vmul.f32 %v612, %v582
        %v625 = vrot.slane %v621, 2
        %v627 = vadd.f32 %v622, %v625
        %v628 = vadd.f32 %v623, %v625
        %629 = vset.pattern.permute.xlu0 2
        %630 = vperm.xlu0 %629, %v448
        %v631 = vpop.permute.xlu0 %630
        %v632 = vrot.slane %v631, 2
        %v634 = vmul.f32 %v627, %v632
        %v635 = vmul.f32 %v628, %v632
        %v638 = vrot.slane %v634, 6
        %v639 = vrot.slane %v635, 6
        %v640 = vsel %vm545, %v638, %v639
        %v642 = vsel %vm357, %v640, 0.0
        %v643 = vrot.slane %v642, 4
        %v644 = vadd.f32 %v642, %v643
        %v645 = vrot.slane %v644, 2
        %v646 = vadd.f32 %v644, %v645
        %v647 = vrot.slane %v646, 1
        %v648 = vadd.f32 %v646, %v647
        %v649 = vlaneseq
        %v650 = vshrl.u32 %v649, 7
        %v651 = vsub.s32 3, %v650
        %v652 = vrot.slane %v506, %v651
        %v653 = vmul.f32 %v652, %v221
        %v654 = vmul.f32 %v652, %v222
        %v655 = vmul.f32 %v653, 1.442695
        %v656 = vpow.pop %v655
        %v657 = vmul.f32 %v654, 1.442695
        %v658 = vpow.pop %v657
        %659 = vset.pattern.permute.xlu0 3
        %660 = vperm.xlu0 %659, %v447
        %v661 = vpop.permute.xlu0 %660
        %v663 = vlaneseq
        %v664 = vshrl.u32 %v663, 7
        %v665 = vsub.s32 3, %v664
        %v666 = vrot.slane %v507, %v665
        %v667 = vmul.f32 %v661, %v666
        %v668 = vmul.f32 %v656, %v627
        %v669 = vmul.f32 %v658, %v628
        %v671 = vrot.slane %v667, 2
        %v673 = vadd.f32 %v668, %v671
        %v674 = vadd.f32 %v669, %v671
        %675 = vset.pattern.permute.xlu0 3
        %676 = vperm.xlu0 %675, %v448
        %v677 = vpop.permute.xlu0 %676
        %v678 = vrot.slane %v677, 2
        %v680 = vmul.f32 %v673, %v678
        %v681 = vmul.f32 %v674, %v678
        %v684 = vrot.slane %v680, 6
        %v685 = vrot.slane %v681, 6
        %v686 = vsel %vm545, %v684, %v685
        %v688 = vsel %vm357, %v686, 0.0
        %v689 = vrot.slane %v688, 4
        %v690 = vadd.f32 %v688, %v689
        %v691 = vrot.slane %v690, 2
        %v692 = vadd.f32 %v690, %v691
        %v693 = vrot.slane %v692, 1
        %v694 = vadd.f32 %v692, %v693
        %v695 = vlaneseq
        %v696 = vshrl.u32 %v695, 7
        %v697 = vsub.s32 4, %v696
        %v698 = vrot.slane %v506, %v697
        %v699 = vmul.f32 %v698, %v221
        %v700 = vmul.f32 %v698, %v222
        %v701 = vmul.f32 %v699, 1.442695
        %v702 = vpow.pop %v701
        %v703 = vmul.f32 %v700, 1.442695
        %v704 = vpow.pop %v703
        %705 = vset.pattern.permute.xlu0 4
        %706 = vperm.xlu0 %705, %v447
        %v707 = vpop.permute.xlu0 %706
        %v709 = vlaneseq
        %v710 = vshrl.u32 %v709, 7
        %v711 = vsub.s32 4, %v710
        %v712 = vrot.slane %v507, %v711
        %v713 = vmul.f32 %v707, %v712
        %v714 = vmul.f32 %v702, %v673
        %v715 = vmul.f32 %v704, %v674
        %v717 = vrot.slane %v713, 2
        %v719 = vadd.f32 %v714, %v717
        %v720 = vadd.f32 %v715, %v717
        %721 = vset.pattern.permute.xlu0 4
        %722 = vperm.xlu0 %721, %v448
        %v723 = vpop.permute.xlu0 %722
        %v724 = vrot.slane %v723, 2
        %v726 = vmul.f32 %v719, %v724
        %v727 = vmul.f32 %v720, %v724
        %v730 = vrot.slane %v726, 6
        %v731 = vrot.slane %v727, 6
        %v732 = vsel %vm545, %v730, %v731
        %v734 = vsel %vm357, %v732, 0.0
        %v735 = vrot.slane %v734, 4
        %v736 = vadd.f32 %v734, %v735
        %v737 = vrot.slane %v736, 2
        %v738 = vadd.f32 %v736, %v737
        %v739 = vrot.slane %v738, 1
        %v740 = vadd.f32 %v738, %v739
        %v741 = vlaneseq
        %v742 = vshrl.u32 %v741, 7
        %v743 = vsub.s32 5, %v742
        %v744 = vrot.slane %v506, %v743
        %v745 = vmul.f32 %v744, %v221
        %v746 = vmul.f32 %v744, %v222
        %v747 = vmul.f32 %v745, 1.442695
        %v748 = vpow.pop %v747
        %v749 = vmul.f32 %v746, 1.442695
        %v750 = vpow.pop %v749
        %751 = vset.pattern.permute.xlu0 5
        %752 = vperm.xlu0 %751, %v447
        %v753 = vpop.permute.xlu0 %752
        %v755 = vlaneseq
        %v756 = vshrl.u32 %v755, 7
        %v757 = vsub.s32 5, %v756
        %v758 = vrot.slane %v507, %v757
        %v759 = vmul.f32 %v753, %v758
        %v760 = vmul.f32 %v748, %v719
        %v761 = vmul.f32 %v750, %v720
        %v763 = vrot.slane %v759, 2
        %v765 = vadd.f32 %v760, %v763
        %v766 = vadd.f32 %v761, %v763
        %767 = vset.pattern.permute.xlu0 5
        %768 = vperm.xlu0 %767, %v448
        %v769 = vpop.permute.xlu0 %768
        %v770 = vrot.slane %v769, 2
        %v772 = vmul.f32 %v765, %v770
        %v773 = vmul.f32 %v766, %v770
        %v776 = vrot.slane %v772, 6
        %v777 = vrot.slane %v773, 6
        %v778 = vsel %vm545, %v776, %v777
        %v780 = vsel %vm357, %v778, 0.0
        %v781 = vrot.slane %v780, 4
        %v782 = vadd.f32 %v780, %v781
        %v783 = vrot.slane %v782, 2
        %v784 = vadd.f32 %v782, %v783
        %v785 = vrot.slane %v784, 1
        %v786 = vadd.f32 %v784, %v785
        %v787 = vlaneseq
        %v788 = vshrl.u32 %v787, 7
        %v789 = vsub.s32 6, %v788
        %v790 = vrot.slane %v506, %v789
        %v791 = vmul.f32 %v790, %v221
        %v792 = vmul.f32 %v790, %v222
        %v793 = vmul.f32 %v791, 1.442695
        %v794 = vpow.pop %v793
        %v795 = vmul.f32 %v792, 1.442695
        %v796 = vpow.pop %v795
        %797 = vset.pattern.permute.xlu0 6
        %798 = vperm.xlu0 %797, %v447
        %v799 = vpop.permute.xlu0 %798
        %v801 = vlaneseq
        %v802 = vshrl.u32 %v801, 7
        %v803 = vsub.s32 6, %v802
        %v804 = vrot.slane %v507, %v803
        %v805 = vmul.f32 %v799, %v804
        %v806 = vmul.f32 %v794, %v765
        %v807 = vmul.f32 %v796, %v766
        %v809 = vrot.slane %v805, 2
        %v811 = vadd.f32 %v806, %v809
        %v812 = vadd.f32 %v807, %v809
        %813 = vset.pattern.permute.xlu0 6
        %814 = vperm.xlu0 %813, %v448
        %v815 = vpop.permute.xlu0 %814
        %v816 = vrot.slane %v815, 2
        %v818 = vmul.f32 %v811, %v816
        %v819 = vmul.f32 %v812, %v816
        %v822 = vrot.slane %v818, 6
        %v823 = vrot.slane %v819, 6
        %v824 = vsel %vm545, %v822, %v823
        %v826 = vsel %vm357, %v824, 0.0
        %v827 = vrot.slane %v826, 4
        %v828 = vadd.f32 %v826, %v827
        %v829 = vrot.slane %v828, 2
        %v830 = vadd.f32 %v828, %v829
        %v831 = vrot.slane %v830, 1
        %v832 = vadd.f32 %v830, %v831
        %v833 = vlaneseq
        %v834 = vshrl.u32 %v833, 7
        %v835 = vsub.s32 7, %v834
        %v836 = vrot.slane %v506, %v835
        %v837 = vmul.f32 %v836, %v221
        %v838 = vmul.f32 %v836, %v222
        %v839 = vmul.f32 %v837, 1.442695
        %v840 = vpow.pop %v839
        %v841 = vmul.f32 %v838, 1.442695
        %v842 = vpow.pop %v841
        %843 = vset.pattern.permute.xlu0 7
        %844 = vperm.xlu0 %843, %v447
        %v845 = vpop.permute.xlu0 %844
        %v847 = vlaneseq
        %v848 = vshrl.u32 %v847, 7
        %v849 = vsub.s32 7, %v848
        %v850 = vrot.slane %v507, %v849
        %v851 = vmul.f32 %v845, %v850
        %v852 = vmul.f32 %v840, %v811
        %v853 = vmul.f32 %v842, %v812
        %v855 = vrot.slane %v851, 2
        %v857 = vadd.f32 %v852, %v855
        %v858 = vadd.f32 %v853, %v855
        %859 = vset.pattern.permute.xlu0 7
        %860 = vperm.xlu0 %859, %v448
        %v861 = vpop.permute.xlu0 %860
        %v862 = vrot.slane %v861, 2
        %v864 = vmul.f32 %v857, %v862
        %v865 = vmul.f32 %v858, %v862
        %v868 = vrot.slane %v864, 6
        %v869 = vrot.slane %v865, 6
        %v870 = vsel %vm545, %v868, %v869
        %v872 = vsel %vm357, %v870, 0.0
        %v873 = vrot.slane %v872, 4
        %v874 = vadd.f32 %v872, %v873
        %v875 = vrot.slane %v874, 2
        %v876 = vadd.f32 %v874, %v875
        %v877 = vrot.slane %v876, 1
        %v878 = vadd.f32 %v876, %v877
        %vm879 = vcmask 1040384
        %v880 = vsel %vm879, %v556, %v602
        %v881 = vsel %vm545, %v880, %v648
        %vm882 = vcmask 1042432
        %v883 = vsel %vm882, %v881, %v694
        %vm884 = vcmask 1043456
        %v885 = vsel %vm884, %v883, %v740
        %vm886 = vcmask 1044480
        %v887 = vsel %vm886, %v885, %v786
        %vm888 = vcmask 1045504
        %v889 = vsel %vm888, %v887, %v832
        %vm890 = vcmask 1046528
        %v891 = vsel %vm890, %v889, %v878
        %v892 = vlaneseq
        %v893 = vshrl.u32 %v892, 7
        %v894 = vsub.s32 0, %v893
        %v895 = vrot.slane %v223, %v894
        %v896 = vmul.f32 %v348, %v895
        %v897 = vadd.f32 %v891, %v896
        %v898 = vxor.u32 %v299, 2147483648
        %v899 = vmul.f32 %v898, 1.442695
        %v900 = vpow.pop %v899
        %v901 = vadd.f32 %v900, 1.0
        %v902 = vrcp.pop %v901
        %v903 = vmul.f32 1.0, %v902
        %v904 = vmul.f32 %v299, %v903
        %906 = vrot.lane.b32.xlu0 %v904, 64
        %v907 = vpop.permute.xlu0 %906
        %v909 = vmul.f32 %v897, %v907
        %v910 = vld [vmem:[%s3] sm:$0xff]
        %v911 = vld [vmem:[%s3 + $0x8] sm:$0xff]
        %v912 = vld [vmem:[%s3 + $0x10] sm:$0xff]
        %v913 = vld [vmem:[%s3 + $0x18] sm:$0xff]
        %v914 = vld [vmem:[%s3 + $0x20] sm:$0xff]
        %v915 = vld [vmem:[%s3 + $0x28] sm:$0xff]
        %v916 = vld [vmem:[%s3 + $0x30] sm:$0xff]
        %v917 = vld [vmem:[%s3 + $0x38] sm:$0xff]
        %v918 = vlaneseq
        %v919 = vshrl.u32 %v918, 7
        %v920 = vsub.s32 1, %v919
        %v921 = vrot.slane %v223, %v920
        %v923 = vsel %vm357, %v909, 0
        %925 = vmatprep.subr.mxu0 0.0
        %926 = vmatpush1.msra.mxu0 0.0
        %927 = vmatprep.subr.mxu0 0.0
        %928 = vmatpush1.msra.mxu0 0.0
        %929 = vmatprep.subr.mxu0 0.0
        %930 = vmatpush1.msra.mxu0 0.0
        %931 = vmatprep.subr.mxu0 0.0
        %932 = vmatpush1.msra.mxu0 0.0
        %933 = vmatprep.subr.mxu0 0.0
        %934 = vmatpush1.msra.mxu0 0.0
        %935 = vmatprep.subr.mxu0 0.0
        %936 = vmatpush1.msra.mxu0 0.0
        %937 = vmatprep.subr.mxu0 0.0
        %938 = vmatpush1.msra.mxu0 0.0
        %939 = vmatprep.subr.mxu0 0.0
        %940 = vmatpush1.msra.mxu0 0.0
        %941 = vmatprep.subr.mxu0 0.0
        %942 = vmatpush1.msra.mxu0 %v917
        %943 = vmatprep.subr.mxu0 0.0
        %944 = vmatpush1.msra.mxu0 %v916
        %945 = vmatprep.subr.mxu0 0.0
        %946 = vmatpush1.msra.mxu0 %v915
        %947 = vmatprep.subr.mxu0 0.0
        %948 = vmatpush1.msra.mxu0 %v914
        %949 = vmatprep.subr.mxu0 0.0
        %950 = vmatpush1.msra.mxu0 %v913
        %951 = vmatprep.subr.mxu0 0.0
        %952 = vmatpush1.msra.mxu0 %v912
        %953 = vmatprep.subr.mxu0 0.0
        %954 = vmatpush1.msra.mxu0 %v911
        %955 = vmatprep.subr.mxu0 0.0
        %956 = vmatpush1.msra.mxu0 %v910
        %957 = vmatprep.subr.mxu0 0.0
        %958 = vmatpush2.msra.mxu0 0.0
        %959 = vmatprep.subr.mxu0 0.0
        %960 = vmatpush2.msra.mxu0 0.0
        %961 = vmatprep.subr.mxu0 0.0
        %962 = vmatpush2.msra.mxu0 0.0
        %963 = vmatprep.subr.mxu0 0.0
        %964 = vmatpush2.msra.mxu0 0.0
        %965 = vmatprep.subr.mxu0 0.0
        %966 = vmatpush2.msra.mxu0 0.0
        %967 = vmatprep.subr.mxu0 0.0
        %968 = vmatpush2.msra.mxu0 0.0
        %969 = vmatprep.subr.mxu0 0.0
        %970 = vmatpush2.msra.mxu0 0.0
        %971 = vmatprep.subr.mxu0 0.0
        %972 = vmatpush2.msra.mxu0 0.0
        %973 = vmatprep.subr.mxu0 0.0
        %974 = vmatpush2.msra.mxu0 0.0
        %975 = vmatprep.subr.mxu0 0.0
        %976 = vmatpush2.msra.mxu0 0.0
        %977 = vmatprep.subr.mxu0 0.0
        %978 = vmatpush2.msra.mxu0 0.0
        %979 = vmatprep.subr.mxu0 0.0
        %980 = vmatpush2.msra.mxu0 0.0
        %981 = vmatprep.subr.mxu0 0.0
        %982 = vmatpush2.msra.mxu0 0.0
        %983 = vmatprep.subr.mxu0 0.0
        %984 = vmatpush2.msra.mxu0 0.0
        %985 = vmatprep.subr.mxu0 0.0
        %986 = vmatpush2.msra.mxu0 0.0
        %987 = vmatprep.subr.mxu0 0.0
        %988 = vmatpush2.msra.mxu0 0.0
        %989 = vmatprep.mubr.f32.mxu0 0.0
        %990 = vmatmul.mubr.f32.gmra.mxu0 %v923
        %v991 = vpop.f32.mrf.mxu0
        %v992 = vadd.f32 %v921, %v991
        %v993 = vpop.f32.mrf.mxu0
        %994 = vdwg.mxu0
        %995 = vst.msk [vmem:[%s215] sm:$0xff] %vm228, %v992
        %s996 = sand.u32 %s137, 1
        %s997 = scalar_lea.sflag [#allocation3], %s996
        %s998 = sand.u32 %s137, 1
        %s999 = smul.addr %s998, 8
        %s1000 = scalar_lea.vmem [#allocation2], %s999
        // Predicated region
        $region41: #{tpu_custom_call.1} parent=39 // pred_check
          %p1001 = pneg %p147
        $region42: #{tpu_custom_call.1} parent=39 // pred_check_branch
          %1003 = sbr.rel (%p1001) target = $region44
        $region43: #{tpu_custom_call.1} parent=39 // pred_region
          %s1005 = ssub.s32 128, 128
          %1006 = vsyncadd %s997, %s1005
          %s1007 = smul.addr %s19, 128
          %s1008 = scalar_lea.hbm %s5, %s1007
          %s1010 = sshll.u32 %s1000, 4
          %s1011 = int_to_ptr.vmem [resolvable:$true] %s1010
          %1013 = dma.vmem_to_hbm [thread:$0]  %s1011, 128, %s1008, %s997
        $region44: #{tpu_custom_call.1} parent=39 // pred_fallthru
          _
      $region40: #{tpu_custom_call.1} parent=5 // pred_fallthru
        _
      %p1014 = scmp.le.s32.totalorder 2, %s14
      // Predicated region
      $region45: #{tpu_custom_call.1} parent=5 // pred_check
        %p1015 = pneg %p1014
      $region46: #{tpu_custom_call.1} parent=5 // pred_check_branch
        %1017 = sbr.rel (%p1015) target = $region48
      $region47: #{tpu_custom_call.1} parent=5 // pred_region
        %s1018 = ssub.s32 %s14, 2
        // Predicated region
        $region49: #{tpu_custom_call.1} parent=47 // pred_check
          %p1019 = pneg %p153
        $region50: #{tpu_custom_call.1} parent=47 // pred_check_branch
          %1021 = sbr.rel (%p1019) target = $region52
        $region51: #{tpu_custom_call.1} parent=47 // pred_region
          %s1022 = sand.u32 %s138, 1
          %s1023 = scalar_lea.sflag [#allocation3], %s1022
          %s1024 = sand.u32 %s138, 1
          %s1025 = smul.addr %s1024, 8
          %s1026 = scalar_lea.vmem [#allocation2], %s1025
          %1027 = dma.done %s1023, 128
        $region52: #{tpu_custom_call.1} parent=47 // pred_fallthru
          _
      $region48: #{tpu_custom_call.1} parent=5 // pred_fallthru
        _
    $region6: #{tpu_custom_call.1} parent=1 // loop_footer
      %s18 = sadd.s32 1, %s14
    $region7: #{tpu_custom_call.1} parent=1 // loop_footer_branch
      %13 = sbr.rel target = $region3
    $region8: #{tpu_custom_call.1} parent=1 // loop_exit
      _
    %1028 = vsyncpa [#allocation3], 1
    %s1029 = scalar_lea.sflag [#allocation3], 1
    %1030 = vsyncpa %s1029, 1

</llo_original>
